<compile_context>
chip_gen: v7x
topology: tpu7x:2x2x1
jax: 0.10.0
libtpu: 0.0.40
codegen_flags: <defaults>
</compile_context>

<pallas_src>
import math
from functools import partial

import jax
import jax.numpy as jnp
from jax.experimental import pallas as pl
from jax.experimental.pallas import tpu as pltpu


_PAD = 128   # lane-aligned zero border for the tiny channel-conv scratch


# ------------------------------ small helpers -------------------------------
def _eca_kernel_size(channel, b=1, gamma=2):
    k = int(abs((math.log(channel, 2) + b) / gamma))
    return k if k % 2 else k + 1


def _round_up(x, m):
    return (x + m - 1) // m * m


def _budgets(itemsize):
    """Generation-aware VMEM budgets (v7x: 64 MiB VMEM + 2 TCs; v5e/v6e: 128 MiB)."""
    try:
        vmem_cap = int(pltpu.get_tpu_info().vmem_capacity_bytes)
    except Exception:
        vmem_cap = 64 << 20                  # unknown -> assume the tighter budget
    small_vmem = vmem_cap <= (64 << 20)      # v7x-class
    cap = (40 << 20) if small_vmem else (96 << 20)
    # Per-step worst case: 2x in + 2x out double buffers (io dtype) plus a few
    # f32 tile-sized live values inside the kernel -> 4*t + 16*(t/itemsize) bytes.
    tile_max = int((cap - (4 << 20)) // (4 + 16 // itemsize))
    return {"vmem_cap": cap, "tile_max": tile_max, "tile_target": 1 << 20,
            "two_tc": small_vmem}


def _vmem_limit(tile_bytes, itemsize, cap):
    est = 4 * tile_bytes + (tile_bytes // itemsize) * 16 + (4 << 20)
    return int(min(cap, max(24 << 20, est)))


def _pick_batch_block(n, per_batch_bytes, target_bytes, max_bytes):
    """Divisor of n capped at n//2 (keeps >=2 grid steps for pipelining and the
    second v7x TensorCore): smallest divisor reaching the tile-size target,
    else the largest that fits the budget."""
    cap = max(1, n // 2) if n > 1 else 1
    divs = [d for d in range(1, cap + 1) if n % d == 0]
    fit = [d for d in divs if d * per_batch_bytes <= max_bytes]
    if not fit:
        return 1
    for d in fit:
        if d * per_batch_bytes >= target_bytes:
            return d
    return max(fit)


# ------------------------------ kernel bodies -------------------------------
def _conv_sigmoid(y, w_ref, pad_ref):
    """ECA 1-D conv along channels on pooled means y:(nb,C) f32, then sigmoid.

    z[c] = sum_j w[j] * y[c + j - p]  (zero padded at the channel edges)

    k shifted FMA taps against a small zero-bordered VMEM scratch (pad_ref:
    (nb, C + 2*_PAD); y stored lane-aligned at offset _PAD). O(nb*C) work.
    """
    k = w_ref.shape[0]
    p = (k - 1) // 2
    C = y.shape[-1]
    pad_ref[...] = jnp.zeros_like(pad_ref)
    pad_ref[:, _PAD:_PAD + C] = y
    z = jnp.zeros_like(y)
    for j in range(k):                       # k is 1/3/5 and static -> unrolled taps
        off = _PAD + j - p
        z = z + w_ref[j] * pad_ref[:, off:off + C]
    return jax.nn.sigmoid(z)


def _fused_kernel(x_ref, w_ref, o_ref, pad_ref, *, inv_hw):
    # x_ref / o_ref: (nb, C, H, W) io dtype ; w_ref: (k,) f32 in SMEM.
    # Pooled mean with f32 accumulation (no full-tile f32 materialization).
    y = jnp.sum(jnp.sum(x_ref[...], axis=-1, dtype=jnp.float32), axis=-1) * inv_hw
    s = _conv_sigmoid(y, w_ref, pad_ref)                      # (nb, C) f32
    # Multiply in the io dtype; only the tiny (nb,C) attention vector is cast.
    o_ref[...] = x_ref[...] * s[:, :, None, None].astype(o_ref.dtype)


def _pool_conv_kernel(x_ref, w_ref, s_ref, acc_ref, pad_ref, *, inv_hw):
    # Pass 1 (streaming): x_ref (nb, C, tH, W); s_ref (nb, C, 1) written on the
    # last H-step. H axis is the trailing "arbitrary" reduction axis.
    h = pl.program_id(1)

    @pl.when(h == 0)
    def _():
        acc_ref[...] = jnp.zeros_like(acc_ref)

    acc_ref[...] += jnp.sum(jnp.sum(x_ref[...], axis=-1, dtype=jnp.float32), axis=-1)

    @pl.when(h == pl.num_programs(1) - 1)
    def _():
        y = acc_ref[...] * inv_hw
        s_ref[...] = _conv_sigmoid(y, w_ref, pad_ref)[:, :, None]


def _scale_kernel(s_ref, x_ref, o_ref):
    # Pass 2: broadcast multiply in the io dtype. s_ref (nb,C,1) f32.
    scale = s_ref[...][..., None].astype(o_ref.dtype)          # (nb, C, 1, 1)
    o_ref[...] = x_ref[...] * scale


# -------------------------------- wrapper -----------------------------------
def channel_att_pallas(x, conv_w1d, *, force_two_pass=False, donate_input=False):
    """x: (N, C, H, W) float32/bfloat16 ; conv_w1d: (k,) Conv1d(1,1,k,bias=False)."""
    N, C, H, W = x.shape
    HW = H * W
    k = int(conv_w1d.shape[0])
    p = (k - 1) // 2
    assert p <= _PAD
    dtype = x.dtype
    itemsize = jnp.dtype(dtype).itemsize
    inv_hw = 1.0 / float(HW)
    w = conv_w1d.astype(jnp.float32)          # k taps, live in SMEM inside the kernels

    budgets = _budgets(itemsize)
    sub = max(8, 32 // itemsize)              # sublane packing for VMEM sizing
    wp = _round_up(W, 128)                    # lane padding for VMEM sizing
    slab = C * _round_up(H, sub) * wp * itemsize   # per-batch VMEM footprint

    # Streaming tile along H (multiple of 8, W stays the full minor dim -> no pad).
    h_cands = [d for d in range(8, H, 8) if H % d == 0]
    tH = None
    if h_cands:
        fit = [d for d in h_cands
               if C * _round_up(d, sub) * wp * itemsize <= budgets["tile_max"]]
        tH = max(fit) if fit else min(h_cands)

    use_fused = slab <= budgets["tile_max"]
    # Batch-1 large maps on 2-TC parts: prefer the HW-tiled two-pass grid so the
    # second TensorCore and prefetch/writeback pipelining have work.
    if use_fused and budgets["two_tc"] and N == 1 and tH is not None and slab > (2 << 20):
        use_fused = False
    if force_two_pass and tH is not None:
        use_fused = False
    if tH is None:
        # TODO(synk): shapes with huge C*W and an untileable H fall back to one
        # big fused block instead of tiling along W/C.
        use_fused = True

    if use_fused:
        # -------- fused single-pass path (x read once, no wrapper data movement) ----
        nb = _pick_batch_block(N, slab, budgets["tile_target"], budgets["tile_max"])
        tile_bytes = nb * slab
        return pl.pallas_call(
            partial(_fused_kernel, inv_hw=inv_hw),
            out_shape=jax.ShapeDtypeStruct((N, C, H, W), dtype),
            grid_spec=pltpu.PrefetchScalarGridSpec(
                num_scalar_prefetch=0,
                grid=(N // nb,),
                in_specs=[
                    pl.BlockSpec((nb, C, H, W), lambda n: (n, 0, 0, 0)),
                    pl.BlockSpec(memory_space=pltpu.MemorySpace.SMEM),
                ],
                out_specs=pl.BlockSpec((nb, C, H, W), lambda n: (n, 0, 0, 0)),
                scratch_shapes=[pltpu.VMEM((nb, C + 2 * _PAD), jnp.float32)],
            ),
            compiler_params=pltpu.CompilerParams(
                dimension_semantics=("parallel",),
                vmem_limit_bytes=_vmem_limit(tile_bytes, itemsize, budgets["vmem_cap"]),
            ),
            input_output_aliases=({0: 0} if donate_input else {}),
        )(x, w)

    # -------- two-pass streaming path (large per-batch slab; H-tiled, no pad) -------
    per_batch_tile = C * _round_up(tH, sub) * wp * itemsize
    nb = _pick_batch_block(N, per_batch_tile, budgets["tile_target"], budgets["tile_max"])
    tile_bytes = nb * per_batch_tile
    grid = (N // nb, H // tH)
    vlim = _vmem_limit(tile_bytes, itemsize, budgets["vmem_cap"])

    # Pass 1: streamed pooled mean + channel conv + sigmoid -> s: (N, C, 1) f32.
    s = pl.pallas_call(
        partial(_pool_conv_kernel, inv_hw=inv_hw),
        out_shape=jax.ShapeDtypeStruct((N, C, 1), jnp.float32),
        grid_spec=pltpu.PrefetchScalarGridSpec(
            num_scalar_prefetch=0,
            grid=grid,
            in_specs=[
                pl.BlockSpec((nb, C, tH, W), lambda n, h: (n, 0, h, 0)),
                pl.BlockSpec(memory_space=pltpu.MemorySpace.SMEM),
            ],
            out_specs=pl.BlockSpec((nb, C, 1), lambda n, h: (n, 0, 0)),
            scratch_shapes=[
                pltpu.VMEM((nb, C), jnp.float32),
                pltpu.VMEM((nb, C + 2 * _PAD), jnp.float32),
            ],
        ),
        compiler_params=pltpu.CompilerParams(
            dimension_semantics=("parallel", "arbitrary"),
            vmem_limit_bytes=vlim,
        ),
    )(x, w)

    # Pass 2: broadcast multiply; fully parallel grid (batch x H tiles).
    return pl.pallas_call(
        _scale_kernel,
        out_shape=jax.ShapeDtypeStruct((N, C, H, W), dtype),
        grid_spec=pltpu.PrefetchScalarGridSpec(
            num_scalar_prefetch=0,
            grid=grid,
            in_specs=[
                pl.BlockSpec((nb, C, 1), lambda n, h: (n, 0, 0)),
                pl.BlockSpec((nb, C, tH, W), lambda n, h: (n, 0, h, 0)),
            ],
            out_specs=pl.BlockSpec((nb, C, tH, W), lambda n, h: (n, 0, h, 0)),
        ),
        compiler_params=pltpu.CompilerParams(
            dimension_semantics=("parallel", "parallel"),
            vmem_limit_bytes=vlim,
        ),
    )(s, x)


def channel_att_reference(x, conv_w1d):
    """Pure-JAX reference matching the PyTorch forward."""
    N, C, H, W = x.shape
    k = conv_w1d.shape[0]
    p = (k - 1) // 2
    y = jnp.mean(x.astype(jnp.float32), axis=(2, 3))         # (N, C)
    y_pad = jnp.pad(y, ((0, 0), (p, p)))                      # zero pad along channels
    z = jnp.zeros_like(y)
    for j in range(k):
        z = z + conv_w1d[j] * y_pad[:, j:j + C]
    s = jax.nn.sigmoid(z)[:, :, None, None]
    return x.astype(jnp.float32) * s


if __name__ == "__main__":
    # Small shapes consistent with the module: batch=2, channels=16, spatial=16x16.
    N, C, H, W = 2, 16, 16, 16
    k = _eca_kernel_size(C)                                   # -> 3 for C=16
    key = jax.random.PRNGKey(0)
    kx, kw = jax.random.split(key)

    x = jax.random.normal(kx, (N, C, H, W), dtype=jnp.float32)
    bound = 1.0 / math.sqrt(k)
    conv_w1d = jax.random.uniform(kw, (k,), dtype=jnp.float32,
                                  minval=-bound, maxval=bound)

    ref = channel_att_reference(x, conv_w1d)

    # Fused single-pass path.
    out_fused = jax.block_until_ready(channel_att_pallas(x, conv_w1d))
    assert jnp.allclose(out_fused, ref, atol=1e-5, rtol=1e-5), "fused path mismatch"

    # Streamed two-pass path (large-slab fallback), forced here for validation.
    out_stream = jax.block_until_ready(
        channel_att_pallas(x, conv_w1d, force_two_pass=True))
    assert jnp.allclose(out_stream, ref, atol=1e-5, rtol=1e-5), "two-pass path mismatch"

    # bf16 I/O path (HBM-bound op -> halves bytes moved); accumulation stays f32.
    xb = x.astype(jnp.bfloat16)
    out_bf16 = jax.block_until_ready(channel_att_pallas(xb, conv_w1d))
    ref_bf16 = channel_att_reference(xb.astype(jnp.float32), conv_w1d)
    assert jnp.allclose(out_bf16.astype(jnp.float32), ref_bf16,
                        atol=3e-2, rtol=3e-2), "bf16 path mismatch"

    print("KERNEL_OK")
</pallas_src>

<mosaic_0001>
module attributes {stable_mosaic.version = 11 : i64} {
  func.func @_fused_kernel(%arg0: i32, %arg1: memref<1x16x16x16xf32, #tpu.memory_space<vmem>>, %arg2: memref<3xf32, #tpu.memory_space<smem>>, %arg3: memref<1x16x16x16xf32, #tpu.memory_space<vmem>>, %arg4: memref<1x272xf32, #tpu.memory_space<vmem>>) attributes {dimension_semantics = [#tpu.dimension_semantics<parallel>], iteration_bounds = array<i64: 2>, scalar_prefetch = 0 : i64, scratch_operands = 1 : i64, tpu.core_type = #tpu.core_type<tc>, window_params = [{transform_indices = @transform_0, window_bounds = array<i64: 1, 16, 16, 16>}, {transform_indices = @transform_1, window_bounds = array<i64: 3>}, {transform_indices = @transform_2, window_bounds = array<i64: 1, 16, 16, 16>}]} {
    %c0 = arith.constant 0 : index
    %c0_0 = arith.constant 0 : index
    %c0_1 = arith.constant 0 : index
    %c0_2 = arith.constant 0 : index
    %0 = vector.load %arg1[%c0, %c0_0, %c0_1, %c0_2] : memref<1x16x16x16xf32, #tpu.memory_space<vmem>>, vector<1x16x16x16xf32>
    %cst = arith.constant dense<0.000000e+00> : vector<1x16x16xf32>
    %1 = vector.multi_reduction <add>, %0, %cst [3] : vector<1x16x16x16xf32> to vector<1x16x16xf32>
    %cst_3 = arith.constant dense<0.000000e+00> : vector<1x16xf32>
    %2 = vector.multi_reduction <add>, %1, %cst_3 [2] : vector<1x16x16xf32> to vector<1x16xf32>
    %cst_4 = arith.constant 3.906250e-03 : f32
    %3 = vector.broadcast %cst_4 : f32 to vector<1x16xf32>
    %4 = arith.mulf %2, %3 : vector<1x16xf32>
    %cst_5 = arith.constant 0.000000e+00 : f32
    %5 = vector.broadcast %cst_5 : f32 to vector<1x272xf32>
    %c0_6 = arith.constant 0 : index
    %c0_7 = arith.constant 0 : index
    %6 = vector.load %arg4[%c0_6, %c0_7] : memref<1x272xf32, #tpu.memory_space<vmem>>, vector<1x272xf32>
    tpu.vector_store %arg4[%c0_6, %c0_7], %5 {strides = array<i32>} : memref<1x272xf32, #tpu.memory_space<vmem>>, vector<1x272xf32>,
    %c0_8 = arith.constant 0 : index
    %c128 = arith.constant 128 : index
    %7 = vector.load %arg4[%c0_8, %c128] : memref<1x272xf32, #tpu.memory_space<vmem>>, vector<1x16xf32>
    tpu.vector_store %arg4[%c0_8, %c128], %4 {strides = array<i32>} : memref<1x272xf32, #tpu.memory_space<vmem>>, vector<1x16xf32>,
    %cst_9 = arith.constant 0.000000e+00 : f32
    %8 = vector.broadcast %cst_9 : f32 to vector<1x16xf32>
    %c0_10 = arith.constant 0 : index
    %9 = memref.load %arg2[%c0_10] : memref<3xf32, #tpu.memory_space<smem>>
    %c0_11 = arith.constant 0 : index
    %c127 = arith.constant 127 : index
    %10 = vector.load %arg4[%c0_11, %c127] : memref<1x272xf32, #tpu.memory_space<vmem>>, vector<1x16xf32>
    %11 = vector.broadcast %9 : f32 to vector<1x16xf32>
    %12 = arith.mulf %11, %10 : vector<1x16xf32>
    %13 = arith.addf %8, %12 : vector<1x16xf32>
    %c1 = arith.constant 1 : index
    %14 = memref.load %arg2[%c1] : memref<3xf32, #tpu.memory_space<smem>>
    %c0_12 = arith.constant 0 : index
    %c128_13 = arith.constant 128 : index
    %15 = vector.load %arg4[%c0_12, %c128_13] : memref<1x272xf32, #tpu.memory_space<vmem>>, vector<1x16xf32>
    %16 = vector.broadcast %14 : f32 to vector<1x16xf32>
    %17 = arith.mulf %16, %15 : vector<1x16xf32>
    %18 = arith.addf %13, %17 : vector<1x16xf32>
    %c2 = arith.constant 2 : index
    %19 = memref.load %arg2[%c2] : memref<3xf32, #tpu.memory_space<smem>>
    %c0_14 = arith.constant 0 : index
    %c129 = arith.constant 129 : index
    %20 = vector.load %arg4[%c0_14, %c129] : memref<1x272xf32, #tpu.memory_space<vmem>>, vector<1x16xf32>
    %21 = vector.broadcast %19 : f32 to vector<1x16xf32>
    %22 = arith.mulf %21, %20 : vector<1x16xf32>
    %23 = arith.addf %18, %22 : vector<1x16xf32>
    %24 = arith.negf %23 : vector<1x16xf32>
    %25 = math.exp %24 : vector<1x16xf32>
    %cst_15 = arith.constant 1.000000e+00 : f32
    %26 = vector.broadcast %cst_15 : f32 to vector<1x16xf32>
    %27 = arith.addf %26, %25 : vector<1x16xf32>
    %28 = arith.divf %26, %27 : vector<1x16xf32>
    %c0_16 = arith.constant 0 : index
    %c0_17 = arith.constant 0 : index
    %c0_18 = arith.constant 0 : index
    %c0_19 = arith.constant 0 : index
    %29 = vector.load %arg1[%c0_16, %c0_17, %c0_18, %c0_19] : memref<1x16x16x16xf32, #tpu.memory_space<vmem>>, vector<1x16x16x16xf32>
    %30 = vector.shape_cast %28 : vector<1x16xf32> to vector<1x16x1x1xf32>
    %31 = vector.broadcast %30 : vector<1x16x1x1xf32> to vector<1x16x16x16xf32>
    %32 = arith.mulf %29, %31 : vector<1x16x16x16xf32>
    %c0_20 = arith.constant 0 : index
    %c0_21 = arith.constant 0 : index
    %c0_22 = arith.constant 0 : index
    %c0_23 = arith.constant 0 : index
    %33 = vector.load %arg3[%c0_20, %c0_21, %c0_22, %c0_23] : memref<1x16x16x16xf32, #tpu.memory_space<vmem>>, vector<1x16x16x16xf32>
    tpu.vector_store %arg3[%c0_20, %c0_21, %c0_22, %c0_23], %32 {strides = array<i32>} : memref<1x16x16x16xf32, #tpu.memory_space<vmem>>, vector<1x16x16x16xf32>,
    return
  }
  func.func @transform_0(%arg0: i32) -> (i32, i32, i32, i32) {
    %c0_i32 = arith.constant 0 : i32
    %c0_i32_0 = arith.constant 0 : i32
    %c0_i32_1 = arith.constant 0 : i32
    %c0_i32_2 = arith.constant 0 : i32
    return %arg0, %c0_i32, %c0_i32_0, %c0_i32_1 : i32, i32, i32, i32
  }
  func.func @transform_1(%arg0: i32) -> i32 {
    %c0_i32 = arith.constant 0 : i32
    %c0_i32_0 = arith.constant 0 : i32
    return %c0_i32 : i32
  }
  func.func @transform_2(%arg0: i32) -> (i32, i32, i32, i32) {
    %c0_i32 = arith.constant 0 : i32
    %c0_i32_0 = arith.constant 0 : i32
    %c0_i32_1 = arith.constant 0 : i32
    %c0_i32_2 = arith.constant 0 : i32
    return %arg0, %c0_i32, %c0_i32_0, %c0_i32_1 : i32, i32, i32, i32
  }
}

</mosaic_0001>

<llo_original>
// kernel: tpu_custom_call.1
$region0: #{tpu_custom_call.1}
  #allocation0 [shape = 'u32[]', space=smem, size = 0x4, offset = 0x4, fixed_abs, tag = 'smem constant byte address 0x4 - core index']
  #allocation1 [shape = 'u32[144,128]{1,0:T(1,128)}', space=vmem, size = 0x12000, scoped, tag = 'internal scratch']
  #allocation2 [shape = 'f32[1,272]{1,0:T(1,128)}', space=vmem, size = 0x600, scoped, tag = 'scratch operand']
  %s0 = inlined_call_operand.hbm [shape: f32[2,16,16,16], index: 0, kind: input, shape index: {}]
  %s1 = inlined_call_operand.vmem [shape: f32[3], index: 1, kind: input, shape index: {}]
  %s2 = inlined_call_operand.hbm [shape: f32[2,16,16,16], index: 2, kind: output, shape index: {}]
  %s3 = sld [smem:[#allocation0]]
  $region49: #{tpu_custom_call.1} parent=0
    _
  %s5 = ssub.s32 1, %s3
  %s6 = scalar_select 0, %s5, %s3
  $region1: #{tpu_custom_call.1} parent=0
    #allocation3 [shape = 'u8[262144]{0}', space=vmem, size = 0x40000, scoped, tag = 'input window, operand 0']
    #allocation4 [shape = 's32[2]{0}', space=sflag, size = 0x8, scoped, tag = 'scoped memory for tpu_custom_call.1']
    #allocation5 [shape = 's32[2]{0}', space=sflag, size = 0x8, scoped, tag = 'scoped memory for tpu_custom_call.1']
    #allocation6 [shape = 's32[2]{0}', space=sflag, size = 0x8, scoped, tag = 'scoped memory for tpu_custom_call.1']
    #allocation7 [shape = 'u8[512]{0}', space=smem, size = 0x200, scoped, tag = 'input window, operand 1, single buffered']
    #allocation8 [shape = 'u8[262144]{0}', space=vmem, size = 0x40000, scoped, tag = 'output window, operand 0']
    %7 = vsyncpa [#allocation4], 0
    %s8 = scalar_lea.sflag [#allocation4], 1
    %9 = vsyncpa %s8, 0
    %10 = vsyncpa [#allocation6], 0
    %11 = vsyncpa [#allocation5], 0
    %s12 = scalar_lea.sflag [#allocation5], 1
    %13 = vsyncpa %s12, 0
    loop: start=0, step=1, limit=4
    $region2: #{tpu_custom_call.1} parent=1 // loop_pre_header
      _
    $region3: #{tpu_custom_call.1} parent=1 // loop_header
      %s15 = sphi 0, %s19
      %p16 = scmp.ge.s32.totalorder %s15, 4
      %s25 = sphi 0, %s27
      %s28 = sphi 0, %s25
      %s29 = sphi 0, %s28
      %s45 = sphi 0, %s29
      %s49 = sphi 0, %s49
      %s51 = sphi 0, %s49
      %s52 = sphi 0, %s51
      %s66 = sphi 0, %s52
      %s72 = sphi 0, %s74
      %s75 = sphi 0, %s72
      %s76 = sphi 0, %s75
      %s92 = sphi 0, %s76
    $region4: #{tpu_custom_call.1} parent=1 // loop_header_branch
      %18 = sbr.rel (%p16) target = $region8
    $region5: #{tpu_custom_call.1} parent=1 // loop_body
      %s20 = ssub.s32 %s15, 1
      %s21 = ssub.s32 %s15, 2
      %s22 = sadd.s32 %s15, 1
      %s23 = ssub.s32 %s15, %s22
      %p24 = scmp.eq.s32.totalorder %s23, 0
      %s26 = sadd.s32 %s25, 1
      %s27 = scalar_select %p24, %s25, %s26
      %p30 = pneg %p24
      %p31 = scmp.eq.s32.totalorder %s15, 1
      %p32 = por %p30, %p31
      %p33 = scmp.ne.s32.totalorder %s25, %s28
      %p34 = scmp.eq.s32.totalorder %s15, 0
      %p35 = por %p33, %p34
      %p36 = scmp.ne.s32.totalorder %s25, %s28
      %p37 = scmp.eq.s32.totalorder %s20, 1
      %p38 = por %p36, %p37
      %p39 = scmp.ne.s32.totalorder %s28, %s29
      %p40 = scmp.eq.s32.totalorder %s20, 0
      %p41 = por %p39, %p40
      %p42 = scmp.ne.s32.totalorder %s28, %s29
      %p43 = scmp.eq.s32.totalorder %s21, 1
      %p44 = por %p42, %p43
      %p46 = scmp.ne.s32.totalorder %s29, %s45
      %p47 = scmp.eq.s32.totalorder %s21, 0
      %p48 = por %p46, %p47
      %s50 = sadd.s32 %s49, 1
      %p53 = scmp.eq.s32.totalorder %s15, 1
      %p54 = scmp.ne.s32.totalorder %s49, %s51
      %p55 = scmp.eq.s32.totalorder %s15, 0
      %p56 = por %p54, %p55
      %p57 = scmp.ne.s32.totalorder %s49, %s51
      %p58 = scmp.eq.s32.totalorder %s20, 1
      %p59 = por %p57, %p58
      %p60 = scmp.ne.s32.totalorder %s51, %s52
      %p61 = scmp.eq.s32.totalorder %s20, 0
      %p62 = por %p60, %p61
      %p63 = scmp.ne.s32.totalorder %s51, %s52
      %p64 = scmp.eq.s32.totalorder %s21, 1
      %p65 = por %p63, %p64
      %p67 = scmp.ne.s32.totalorder %s52, %s66
      %p68 = scmp.eq.s32.totalorder %s21, 0
      %p69 = por %p67, %p68
      %s70 = ssub.s32 %s15, %s22
      %p71 = scmp.eq.s32.totalorder %s70, 0
      %s73 = sadd.s32 %s72, 1
      %s74 = scalar_select %p71, %s72, %s73
      %p77 = pneg %p71
      %p78 = scmp.eq.s32.totalorder %s15, 1
      %p79 = por %p77, %p78
      %p80 = scmp.ne.s32.totalorder %s72, %s75
      %p81 = scmp.eq.s32.totalorder %s15, 0
      %p82 = por %p80, %p81
      %p83 = scmp.ne.s32.totalorder %s72, %s75
      %p84 = scmp.eq.s32.totalorder %s20, 1
      %p85 = por %p83, %p84
      %p86 = scmp.ne.s32.totalorder %s75, %s76
      %p87 = scmp.eq.s32.totalorder %s20, 0
      %p88 = por %p86, %p87
      %p89 = scmp.ne.s32.totalorder %s75, %s76
      %p90 = scmp.eq.s32.totalorder %s21, 1
      %p91 = por %p89, %p90
      %p93 = scmp.ne.s32.totalorder %s76, %s92
      %p94 = scmp.eq.s32.totalorder %s21, 0
      %p95 = por %p93, %p94
      %p96 = scmp.le.s32.totalorder 1, %s15
      %p97 = scmp.lt.s32.totalorder %s15, 3
      %p98 = pnand %p96, %p97
      %p99 = pneg %p98
      // Predicated region
      $region9: #{tpu_custom_call.1} parent=5 // pred_check
        _
      $region10: #{tpu_custom_call.1} parent=5 // pred_check_branch
        %101 = sbr.rel (%p98) target = $region12
      $region11: #{tpu_custom_call.1} parent=5 // pred_region
        %s102 = ssub.s32 %s15, 1
        // Predicated region
        $region13: #{tpu_custom_call.1} parent=11 // pred_check
          %p103 = pneg %p62
        $region14: #{tpu_custom_call.1} parent=11 // pred_check_branch
          %105 = sbr.rel (%p103) target = $region16
        $region15: #{tpu_custom_call.1} parent=11 // pred_region
          %s107 = ssub.s32 16, 16
          %108 = vsyncadd [#allocation6], %s107
          %s110 = sshll.u32 %s1, 4
          %s111 = int_to_ptr.vmem [resolvable:$true] %s110
          %113 = dma.vmem_to_smem %s111, 16, [#allocation7], [#allocation6]
        $region16: #{tpu_custom_call.1} parent=11 // pred_fallthru
          _
      $region12: #{tpu_custom_call.1} parent=5 // pred_fallthru
        _
      %p114 = scmp.lt.s32.totalorder %s15, 2
      // Predicated region
      $region17: #{tpu_custom_call.1} parent=5 // pred_check
        %p115 = pneg %p114
      $region18: #{tpu_custom_call.1} parent=5 // pred_check_branch
        %117 = sbr.rel (%p115) target = $region20
      $region19: #{tpu_custom_call.1} parent=5 // pred_region
        // Predicated region
        $region21: #{tpu_custom_call.1} parent=19 // pred_check
          %p118 = pneg %p35
        $region22: #{tpu_custom_call.1} parent=19 // pred_check_branch
          %120 = sbr.rel (%p118) target = $region24
        $region23: #{tpu_custom_call.1} parent=19 // pred_region
          %s121 = sand.u32 %s25, 1
          %s122 = scalar_lea.sflag [#allocation4], %s121
          %s123 = sand.u32 %s25, 1
          %s124 = smul.addr %s123, 256
          %s125 = scalar_lea.vmem [#allocation3], %s124
          %s127 = ssub.s32 4096, 4096
          %128 = vsyncadd %s122, %s127
          %s129 = smul.addr %s15, 32
          %s130 = smul.addr %s129, 128
          %s131 = scalar_lea.hbm %s0, %s130
          %s132 = sshll.u32 %s125, 4
          %s133 = int_to_ptr.vmem [resolvable:$true] %s132
          %138 = dma.hbm_to_vmem [thread:$0]  %s131, 4096, %s133, %s122, 128, 128, 8
        $region24: #{tpu_custom_call.1} parent=19 // pred_fallthru
          _
      $region20: #{tpu_custom_call.1} parent=5 // pred_fallthru
        _
      %p139 = scmp.le.s32.totalorder 1, %s15
      %p140 = scmp.lt.s32.totalorder %s15, 3
      %p141 = pnand %p139, %p140
      %p142 = pneg %p141
      // Predicated region
      $region25: #{tpu_custom_call.1} parent=5 // pred_check
        _
      $region26: #{tpu_custom_call.1} parent=5 // pred_check_branch
        %144 = sbr.rel (%p141) target = $region28
      $region27: #{tpu_custom_call.1} parent=5 // pred_region
        %s145 = ssub.s32 %s15, 1
        %s146 = sand.u32 %s28, 1
        %s147 = scalar_lea.sflag [#allocation4], %s146
        %s148 = sand.u32 %s28, 1
        %s149 = smul.addr %s148, 256
        %s150 = scalar_lea.vmem [#allocation3], %s149
        // Predicated region
        $region29: #{tpu_custom_call.1} parent=27 // pred_check
          %p151 = pneg %p41
        $region30: #{tpu_custom_call.1} parent=27 // pred_check_branch
          %153 = sbr.rel (%p151) target = $region32
        $region31: #{tpu_custom_call.1} parent=27 // pred_region
          %154 = dma.done %s147, 4096
        $region32: #{tpu_custom_call.1} parent=27 // pred_fallthru
          _
        // Predicated region
        $region33: #{tpu_custom_call.1} parent=27 // pred_check
          %p155 = pneg %p62
        $region34: #{tpu_custom_call.1} parent=27 // pred_check_branch
          %157 = sbr.rel (%p155) target = $region36
        $region35: #{tpu_custom_call.1} parent=27 // pred_region
          %158 = dma.done [#allocation6], 16
        $region36: #{tpu_custom_call.1} parent=27 // pred_fallthru
          _
        %159 = sfence
        %s160 = sand.u32 %s28, 1
        %s161 = scalar_lea.sflag [#allocation4], %s160
        %s162 = sand.u32 %s28, 1
        %s163 = smul.addr %s162, 256
        %s164 = scalar_lea.vmem [#allocation3], %s163
        %p165 = pneg %p41
        %p166 = pneg %p38
        %p167 = pneg %p62
        %p168 = pneg %p59
        %p169 = pneg %p88
        %p170 = pneg %p85
        %s171 = sand.u32 %s75, 1
        %s172 = scalar_lea.sflag [#allocation5], %s171
        %s173 = sand.u32 %s75, 1
        %s174 = smul.addr %s173, 256
        %s175 = scalar_lea.vmem [#allocation8], %s174
        %v176 = vld [vmem:[%s150] sm:$0xff]
        %v177 = vld [vmem:[%s150 + $0x8] sm:$0xff]
        %v178 = vld [vmem:[%s150 + $0x10] sm:$0xff]
        %v179 = vld [vmem:[%s150 + $0x18] sm:$0xff]
        %v180 = vld [vmem:[%s150 + $0x20] sm:$0xff]
        %v181 = vld [vmem:[%s150 + $0x28] sm:$0xff]
        %v182 = vld [vmem:[%s150 + $0x30] sm:$0xff]
        %v183 = vld [vmem:[%s150 + $0x38] sm:$0xff]
        %v184 = vld [vmem:[%s150 + $0x40] sm:$0xff]
        %v185 = vld [vmem:[%s150 + $0x48] sm:$0xff]
        %v186 = vld [vmem:[%s150 + $0x50] sm:$0xff]
        %v187 = vld [vmem:[%s150 + $0x58] sm:$0xff]
        %v188 = vld [vmem:[%s150 + $0x60] sm:$0xff]
        %v189 = vld [vmem:[%s150 + $0x68] sm:$0xff]
        %v190 = vld [vmem:[%s150 + $0x70] sm:$0xff]
        %v191 = vld [vmem:[%s150 + $0x78] sm:$0xff]
        %v192 = vld [vmem:[%s150 + $0x80] sm:$0xff]
        %v193 = vld [vmem:[%s150 + $0x88] sm:$0xff]
        %v194 = vld [vmem:[%s150 + $0x90] sm:$0xff]
        %v195 = vld [vmem:[%s150 + $0x98] sm:$0xff]
        %v196 = vld [vmem:[%s150 + $0xa0] sm:$0xff]
        %v197 = vld [vmem:[%s150 + $0xa8] sm:$0xff]
        %v198 = vld [vmem:[%s150 + $0xb0] sm:$0xff]
        %v199 = vld [vmem:[%s150 + $0xb8] sm:$0xff]
        %v200 = vld [vmem:[%s150 + $0xc0] sm:$0xff]
        %v201 = vld [vmem:[%s150 + $0xc8] sm:$0xff]
        %v202 = vld [vmem:[%s150 + $0xd0] sm:$0xff]
        %v203 = vld [vmem:[%s150 + $0xd8] sm:$0xff]
        %v204 = vld [vmem:[%s150 + $0xe0] sm:$0xff]
        %v205 = vld [vmem:[%s150 + $0xe8] sm:$0xff]
        %v206 = vld [vmem:[%s150 + $0xf0] sm:$0xff]
        %v207 = vld [vmem:[%s150 + $0xf8] sm:$0xff]
        %vm208 = vcmask 130048
        %v209 = vsel %vm208, %v176, 0.0
        %210 = vadd.xlane.f32.xlu0 %v209
        %v211 = vpop.xlane.xlu0 %210
        %v212 = vsel %vm208, %v177, 0.0
        %213 = vadd.xlane.f32.xlu0 %v212
        %v214 = vpop.xlane.xlu0 %213
        %v215 = vsel %vm208, %v178, 0.0
        %216 = vadd.xlane.f32.xlu0 %v215
        %v217 = vpop.xlane.xlu0 %216
        %v218 = vsel %vm208, %v179, 0.0
        %219 = vadd.xlane.f32.xlu0 %v218
        %v220 = vpop.xlane.xlu0 %219
        %v221 = vsel %vm208, %v180, 0.0
        %222 = vadd.xlane.f32.xlu0 %v221
        %v223 = vpop.xlane.xlu0 %222
        %v224 = vsel %vm208, %v181, 0.0
        %225 = vadd.xlane.f32.xlu0 %v224
        %v226 = vpop.xlane.xlu0 %225
        %v227 = vsel %vm208, %v182, 0.0
        %228 = vadd.xlane.f32.xlu0 %v227
        %v229 = vpop.xlane.xlu0 %228
        %v230 = vsel %vm208, %v183, 0.0
        %231 = vadd.xlane.f32.xlu0 %v230
        %v232 = vpop.xlane.xlu0 %231
        %v233 = vsel %vm208, %v184, 0.0
        %234 = vadd.xlane.f32.xlu0 %v233
        %v235 = vpop.xlane.xlu0 %234
        %v236 = vsel %vm208, %v185, 0.0
        %237 = vadd.xlane.f32.xlu0 %v236
        %v238 = vpop.xlane.xlu0 %237
        %v239 = vsel %vm208, %v186, 0.0
        %240 = vadd.xlane.f32.xlu0 %v239
        %v241 = vpop.xlane.xlu0 %240
        %v242 = vsel %vm208, %v187, 0.0
        %243 = vadd.xlane.f32.xlu0 %v242
        %v244 = vpop.xlane.xlu0 %243
        %v245 = vsel %vm208, %v188, 0.0
        %246 = vadd.xlane.f32.xlu0 %v245
        %v247 = vpop.xlane.xlu0 %246
        %v248 = vsel %vm208, %v189, 0.0
        %249 = vadd.xlane.f32.xlu0 %v248
        %v250 = vpop.xlane.xlu0 %249
        %v251 = vsel %vm208, %v190, 0.0
        %252 = vadd.xlane.f32.xlu0 %v251
        %v253 = vpop.xlane.xlu0 %252
        %v254 = vsel %vm208, %v191, 0.0
        %255 = vadd.xlane.f32.xlu0 %v254
        %v256 = vpop.xlane.xlu0 %255
        %v257 = vsel %vm208, %v192, 0.0
        %258 = vadd.xlane.f32.xlu0 %v257
        %v259 = vpop.xlane.xlu0 %258
        %v260 = vsel %vm208, %v193, 0.0
        %261 = vadd.xlane.f32.xlu0 %v260
        %v262 = vpop.xlane.xlu0 %261
        %v263 = vsel %vm208, %v194, 0.0
        %264 = vadd.xlane.f32.xlu0 %v263
        %v265 = vpop.xlane.xlu0 %264
        %v266 = vsel %vm208, %v195, 0.0
        %267 = vadd.xlane.f32.xlu0 %v266
        %v268 = vpop.xlane.xlu0 %267
        %v269 = vsel %vm208, %v196, 0.0
        %270 = vadd.xlane.f32.xlu0 %v269
        %v271 = vpop.xlane.xlu0 %270
        %v272 = vsel %vm208, %v197, 0.0
        %273 = vadd.xlane.f32.xlu0 %v272
        %v274 = vpop.xlane.xlu0 %273
        %v275 = vsel %vm208, %v198, 0.0
        %276 = vadd.xlane.f32.xlu0 %v275
        %v277 = vpop.xlane.xlu0 %276
        %v278 = vsel %vm208, %v199, 0.0
        %279 = vadd.xlane.f32.xlu0 %v278
        %v280 = vpop.xlane.xlu0 %279
        %v281 = vsel %vm208, %v200, 0.0
        %282 = vadd.xlane.f32.xlu0 %v281
        %v283 = vpop.xlane.xlu0 %282
        %v284 = vsel %vm208, %v201, 0.0
        %285 = vadd.xlane.f32.xlu0 %v284
        %v286 = vpop.xlane.xlu0 %285
        %v287 = vsel %vm208, %v202, 0.0
        %288 = vadd.xlane.f32.xlu0 %v287
        %v289 = vpop.xlane.xlu0 %288
        %v290 = vsel %vm208, %v203, 0.0
        %291 = vadd.xlane.f32.xlu0 %v290
        %v292 = vpop.xlane.xlu0 %291
        %v293 = vsel %vm208, %v204, 0.0
        %294 = vadd.xlane.f32.xlu0 %v293
        %v295 = vpop.xlane.xlu0 %294
        %v296 = vsel %vm208, %v205, 0.0
        %297 = vadd.xlane.f32.xlu0 %v296
        %v298 = vpop.xlane.xlu0 %297
        %v299 = vsel %vm208, %v206, 0.0
        %300 = vadd.xlane.f32.xlu0 %v299
        %v301 = vpop.xlane.xlu0 %300
        %v302 = vsel %vm208, %v207, 0.0
        %303 = vadd.xlane.f32.xlu0 %v302
        %v304 = vpop.xlane.xlu0 %303
        %v337 = vlaneseq
        %v338 = vand.u32 %v337, 127
        %v339 = vlaneseq
        %v340 = vshrl.u32 %v339, 7
        %v341 = vsub.s32 %v338, %v340
        %v342 = vrot.slane %v211, %v341
        %v343 = vadd.s32 %v338, 4294967288
        %v344 = vlaneseq
        %v345 = vshrl.u32 %v344, 7
        %v346 = vsub.s32 %v343, %v345
        %v347 = vrot.slane %v214, %v346
        %vm348 = vcmask 130112
        %v349 = vsel %vm348, %v347, %v342
        %v350 = vlaneseq
        %v351 = vshrl.u32 %v350, 7
        %v352 = vsub.s32 %v338, %v351
        %v353 = vrot.slane %v217, %v352
        %v354 = vlaneseq
        %v355 = vshrl.u32 %v354, 7
        %v356 = vsub.s32 %v343, %v355
        %v357 = vrot.slane %v220, %v356
        %v358 = vsel %vm348, %v357, %v353
        %v359 = vlaneseq
        %v360 = vshrl.u32 %v359, 7
        %v361 = vsub.s32 %v338, %v360
        %v362 = vrot.slane %v223, %v361
        %v363 = vlaneseq
        %v364 = vshrl.u32 %v363, 7
        %v365 = vsub.s32 %v343, %v364
        %v366 = vrot.slane %v226, %v365
        %v367 = vsel %vm348, %v366, %v362
        %v368 = vlaneseq
        %v369 = vshrl.u32 %v368, 7
        %v370 = vsub.s32 %v338, %v369
        %v371 = vrot.slane %v229, %v370
        %v372 = vlaneseq
        %v373 = vshrl.u32 %v372, 7
        %v374 = vsub.s32 %v343, %v373
        %v375 = vrot.slane %v232, %v374
        %v376 = vsel %vm348, %v375, %v371
        %v377 = vlaneseq
        %v378 = vshrl.u32 %v377, 7
        %v379 = vsub.s32 %v338, %v378
        %v380 = vrot.slane %v235, %v379
        %v381 = vlaneseq
        %v382 = vshrl.u32 %v381, 7
        %v383 = vsub.s32 %v343, %v382
        %v384 = vrot.slane %v238, %v383
        %v385 = vsel %vm348, %v384, %v380
        %v386 = vlaneseq
        %v387 = vshrl.u32 %v386, 7
        %v388 = vsub.s32 %v338, %v387
        %v389 = vrot.slane %v241, %v388
        %v390 = vlaneseq
        %v391 = vshrl.u32 %v390, 7
        %v392 = vsub.s32 %v343, %v391
        %v393 = vrot.slane %v244, %v392
        %v394 = vsel %vm348, %v393, %v389
        %v395 = vlaneseq
        %v396 = vshrl.u32 %v395, 7
        %v397 = vsub.s32 %v338, %v396
        %v398 = vrot.slane %v247, %v397
        %v399 = vlaneseq
        %v400 = vshrl.u32 %v399, 7
        %v401 = vsub.s32 %v343, %v400
        %v402 = vrot.slane %v250, %v401
        %v403 = vsel %vm348, %v402, %v398
        %v404 = vlaneseq
        %v405 = vshrl.u32 %v404, 7
        %v406 = vsub.s32 %v338, %v405
        %v407 = vrot.slane %v253, %v406
        %v408 = vlaneseq
        %v409 = vshrl.u32 %v408, 7
        %v410 = vsub.s32 %v343, %v409
        %v411 = vrot.slane %v256, %v410
        %v412 = vsel %vm348, %v411, %v407
        %v413 = vlaneseq
        %v414 = vshrl.u32 %v413, 7
        %v415 = vsub.s32 %v338, %v414
        %v416 = vrot.slane %v259, %v415
        %v417 = vlaneseq
        %v418 = vshrl.u32 %v417, 7
        %v419 = vsub.s32 %v343, %v418
        %v420 = vrot.slane %v262, %v419
        %v421 = vsel %vm348, %v420, %v416
        %v422 = vlaneseq
        %v423 = vshrl.u32 %v422, 7
        %v424 = vsub.s32 %v338, %v423
        %v425 = vrot.slane %v265, %v424
        %v426 = vlaneseq
        %v427 = vshrl.u32 %v426, 7
        %v428 = vsub.s32 %v343, %v427
        %v429 = vrot.slane %v268, %v428
        %v430 = vsel %vm348, %v429, %v425
        %v431 = vlaneseq
        %v432 = vshrl.u32 %v431, 7
        %v433 = vsub.s32 %v338, %v432
        %v434 = vrot.slane %v271, %v433
        %v435 = vlaneseq
        %v436 = vshrl.u32 %v435, 7
        %v437 = vsub.s32 %v343, %v436
        %v438 = vrot.slane %v274, %v437
        %v439 = vsel %vm348, %v438, %v434
        %v440 = vlaneseq
        %v441 = vshrl.u32 %v440, 7
        %v442 = vsub.s32 %v338, %v441
        %v443 = vrot.slane %v277, %v442
        %v444 = vlaneseq
        %v445 = vshrl.u32 %v444, 7
        %v446 = vsub.s32 %v343, %v445
        %v447 = vrot.slane %v280, %v446
        %v448 = vsel %vm348, %v447, %v443
        %v449 = vlaneseq
        %v450 = vshrl.u32 %v449, 7
        %v451 = vsub.s32 %v338, %v450
        %v452 = vrot.slane %v283, %v451
        %v453 = vlaneseq
        %v454 = vshrl.u32 %v453, 7
        %v455 = vsub.s32 %v343, %v454
        %v456 = vrot.slane %v286, %v455
        %v457 = vsel %vm348, %v456, %v452
        %v458 = vlaneseq
        %v459 = vshrl.u32 %v458, 7
        %v460 = vsub.s32 %v338, %v459
        %v461 = vrot.slane %v289, %v460
        %v462 = vlaneseq
        %v463 = vshrl.u32 %v462, 7
        %v464 = vsub.s32 %v343, %v463
        %v465 = vrot.slane %v292, %v464
        %v466 = vsel %vm348, %v465, %v461
        %v467 = vlaneseq
        %v468 = vshrl.u32 %v467, 7
        %v469 = vsub.s32 %v338, %v468
        %v470 = vrot.slane %v295, %v469
        %v471 = vlaneseq
        %v472 = vshrl.u32 %v471, 7
        %v473 = vsub.s32 %v343, %v472
        %v474 = vrot.slane %v298, %v473
        %v475 = vsel %vm348, %v474, %v470
        %v476 = vlaneseq
        %v477 = vshrl.u32 %v476, 7
        %v478 = vsub.s32 %v338, %v477
        %v479 = vrot.slane %v301, %v478
        %v480 = vlaneseq
        %v481 = vshrl.u32 %v480, 7
        %v482 = vsub.s32 %v343, %v481
        %v483 = vrot.slane %v304, %v482
        %v484 = vsel %vm348, %v483, %v479
        %vm485 = vcmask 1041409
        %v486 = vsel %vm485, %v358, %v349
        %vm487 = vcmask 1042434
        %v488 = vsel %vm487, %v367, %v486
        %vm489 = vcmask 1043459
        %v490 = vsel %vm489, %v376, %v488
        %vm491 = vcmask 1044484
        %v492 = vsel %vm491, %v385, %v490
        %vm493 = vcmask 1045509
        %v494 = vsel %vm493, %v394, %v492
        %vm495 = vcmask 1046534
        %v496 = vsel %vm495, %v403, %v494
        %vm497 = vcmask 1047559
        %v498 = vsel %vm497, %v412, %v496
        %v499 = vsel %vm485, %v430, %v421
        %v500 = vsel %vm487, %v439, %v499
        %v501 = vsel %vm489, %v448, %v500
        %v502 = vsel %vm491, %v457, %v501
        %v503 = vsel %vm493, %v466, %v502
        %v504 = vsel %vm495, %v475, %v503
        %v505 = vsel %vm497, %v484, %v504
        %v508 = vsel %vm208, %v498, 0.0
        %509 = vadd.xlane.f32.xlu0 %v508
        %v510 = vpop.xlane.xlu0 %509
        %v511 = vsel %vm208, %v505, 0.0
        %512 = vadd.xlane.f32.xlu0 %v511
        %v513 = vpop.xlane.xlu0 %512
        %v514 = vmul.f32 %v510, 0.00390625
        %v515 = vmul.f32 %v513, 0.00390625
        %v516 = vlaneseq
        %vm517 = vcmp.ge.s32.totalorder %v516, 0
        %vm518 = vcmp.lt.s32.totalorder %v516, 272
        %vm519 = vmand %vm517, %vm518
        %520 = vst.msk [vmem:[#allocation2] sm:$0x7] %vm519, 0.0
        %v523 = vlaneseq
        %v524 = vshrl.u32 %v523, 7
        %v525 = vsub.s32 0, %v524
        %v526 = vrot.slane %v514, %v525
        %v527 = vlaneseq
        %v528 = vshrl.u32 %v527, 7
        %v529 = vsub.s32 1, %v528
        %v530 = vrot.slane %v514, %v529
        %v531 = vlaneseq
        %v532 = vshrl.u32 %v531, 7
        %v533 = vsub.s32 2, %v532
        %v534 = vrot.slane %v514, %v533
        %v535 = vlaneseq
        %v536 = vshrl.u32 %v535, 7
        %v537 = vsub.s32 3, %v536
        %v538 = vrot.slane %v514, %v537
        %v539 = vlaneseq
        %v540 = vshrl.u32 %v539, 7
        %v541 = vsub.s32 4, %v540
        %v542 = vrot.slane %v514, %v541
        %v543 = vlaneseq
        %v544 = vshrl.u32 %v543, 7
        %v545 = vsub.s32 5, %v544
        %v546 = vrot.slane %v514, %v545
        %v547 = vlaneseq
        %v548 = vshrl.u32 %v547, 7
        %v549 = vsub.s32 6, %v548
        %v550 = vrot.slane %v514, %v549
        %v551 = vlaneseq
        %v552 = vshrl.u32 %v551, 7
        %v553 = vsub.s32 7, %v552
        %v554 = vrot.slane %v514, %v553
        %v555 = vlaneseq
        %v556 = vshrl.u32 %v555, 7
        %v557 = vsub.s32 0, %v556
        %v558 = vrot.slane %v515, %v557
        %v559 = vlaneseq
        %v560 = vshrl.u32 %v559, 7
        %v561 = vsub.s32 1, %v560
        %v562 = vrot.slane %v515, %v561
        %v563 = vlaneseq
        %v564 = vshrl.u32 %v563, 7
        %v565 = vsub.s32 2, %v564
        %v566 = vrot.slane %v515, %v565
        %v567 = vlaneseq
        %v568 = vshrl.u32 %v567, 7
        %v569 = vsub.s32 3, %v568
        %v570 = vrot.slane %v515, %v569
        %v571 = vlaneseq
        %v572 = vshrl.u32 %v571, 7
        %v573 = vsub.s32 4, %v572
        %v574 = vrot.slane %v515, %v573
        %v575 = vlaneseq
        %v576 = vshrl.u32 %v575, 7
        %v577 = vsub.s32 5, %v576
        %v578 = vrot.slane %v515, %v577
        %v579 = vlaneseq
        %v580 = vshrl.u32 %v579, 7
        %v581 = vsub.s32 6, %v580
        %v582 = vrot.slane %v515, %v581
        %v583 = vlaneseq
        %v584 = vshrl.u32 %v583, 7
        %v585 = vsub.s32 7, %v584
        %v586 = vrot.slane %v515, %v585
        %v587 = vcombine.low %v526, %v530
        %v588 = vcombine.low %v534, %v538
        %v589 = vcombine.low %v542, %v546
        %v590 = vcombine.low %v550, %v554
        %v592 = vunpack.c.l.s4 1966171168
        %v593 = vunpack.c.0.s8 %v592
        %v594 = vlaneseq
        %v595 = vshrl.u32 %v594, 7
        %v596 = vsub.s32 %v593, %v595
        %v597 = vrot.slane %v587, %v596
        %v599 = vunpack.c.l.s4 1966171168
        %v600 = vunpack.c.0.s8 %v599
        %v601 = vlaneseq
        %v602 = vshrl.u32 %v601, 7
        %v603 = vsub.s32 %v600, %v602
        %v604 = vrot.slane %v588, %v603
        %v606 = vunpack.c.l.s4 1966171168
        %v607 = vunpack.c.0.s8 %v606
        %v608 = vlaneseq
        %v609 = vshrl.u32 %v608, 7
        %v610 = vsub.s32 %v607, %v609
        %v611 = vrot.slane %v589, %v610
        %v613 = vunpack.c.l.s4 1966171168
        %v614 = vunpack.c.0.s8 %v613
        %v615 = vlaneseq
        %v616 = vshrl.u32 %v615, 7
        %v617 = vsub.s32 %v614, %v616
        %v618 = vrot.slane %v590, %v617
        %v619 = vcombine.low %v597, %v604
        %v620 = vcombine.low %v611, %v618
        %v622 = vunpack.c.l.s4 1966171168
        %v623 = vunpack.c.0.s8 %v622
        %v624 = vlaneseq
        %v625 = vshrl.u32 %v624, 7
        %v626 = vsub.s32 %v623, %v625
        %v627 = vrot.slane %v619, %v626
        %v629 = vunpack.c.l.s4 1966171168
        %v630 = vunpack.c.0.s8 %v629
        %v631 = vlaneseq
        %v632 = vshrl.u32 %v631, 7
        %v633 = vsub.s32 %v630, %v632
        %v634 = vrot.slane %v620, %v633
        %v635 = vcombine.low %v627, %v634
        %v636 = vcombine.low %v558, %v562
        %v637 = vcombine.low %v566, %v570
        %v638 = vcombine.low %v574, %v578
        %v639 = vcombine.low %v582, %v586
        %v641 = vunpack.c.l.s4 1966171168
        %v642 = vunpack.c.0.s8 %v641
        %v643 = vlaneseq
        %v644 = vshrl.u32 %v643, 7
        %v645 = vsub.s32 %v642, %v644
        %v646 = vrot.slane %v636, %v645
        %v648 = vunpack.c.l.s4 1966171168
        %v649 = vunpack.c.0.s8 %v648
        %v650 = vlaneseq
        %v651 = vshrl.u32 %v650, 7
        %v652 = vsub.s32 %v649, %v651
        %v653 = vrot.slane %v637, %v652
        %v655 = vunpack.c.l.s4 1966171168
        %v656 = vunpack.c.0.s8 %v655
        %v657 = vlaneseq
        %v658 = vshrl.u32 %v657, 7
        %v659 = vsub.s32 %v656, %v658
        %v660 = vrot.slane %v638, %v659
        %v662 = vunpack.c.l.s4 1966171168
        %v663 = vunpack.c.0.s8 %v662
        %v664 = vlaneseq
        %v665 = vshrl.u32 %v664, 7
        %v666 = vsub.s32 %v663, %v665
        %v667 = vrot.slane %v639, %v666
        %v668 = vcombine.low %v646, %v653
        %v669 = vcombine.low %v660, %v667
        %v671 = vunpack.c.l.s4 1966171168
        %v672 = vunpack.c.0.s8 %v671
        %v673 = vlaneseq
        %v674 = vshrl.u32 %v673, 7
        %v675 = vsub.s32 %v672, %v674
        %v676 = vrot.slane %v668, %v675
        %v678 = vunpack.c.l.s4 1966171168
        %v679 = vunpack.c.0.s8 %v678
        %v680 = vlaneseq
        %v681 = vshrl.u32 %v680, 7
        %v682 = vsub.s32 %v679, %v681
        %v683 = vrot.slane %v669, %v682
        %v684 = vcombine.low %v676, %v683
        %685 = vset.pattern.permute.xlu0 0
        %686 = vperm.xlu0 %685, %v635
        %v687 = vpop.permute.xlu0 %686
        %688 = vset.pattern.permute.xlu0 0
        %689 = vperm.xlu0 %688, %v684
        %v690 = vpop.permute.xlu0 %689
        %v691 = vlaneseq
        %v692 = vshrl.u32 %v691, 7
        %v693 = vsub.s32 %v338, %v692
        %v694 = vrot.slane %v687, %v693
        %v695 = vlaneseq
        %v696 = vshrl.u32 %v695, 7
        %v697 = vsub.s32 %v343, %v696
        %v698 = vrot.slane %v690, %v697
        %v699 = vsel %vm348, %v698, %v694
        %v701 = vunpack.c.l.s4 1966171168
        %v702 = vunpack.c.0.s8 %v701
        %v703 = vlaneseq
        %v704 = vshrl.u32 %v703, 7
        %v705 = vsub.s32 %v702, %v704
        %v706 = vrot.slane %v699, %v705
        %v708 = vunpack.c.l.s4 1966171168
        %v709 = vunpack.c.0.s8 %v708
        %v710 = vlaneseq
        %v711 = vshrl.u32 %v710, 7
        %v712 = vsub.s32 %v709, %v711
        %v713 = vrot.slane %v706, %v712
        %vm715 = vcmp.lt.s32.totalorder %v516, 16
        %vm716 = vmand %vm517, %vm715
        %717 = vst.msk [vmem:[#allocation2 + $0x1] sm:$0x1] %vm716, %v713
        %s718 = sld [smem:[#allocation7]]
        %v719 = vld [vmem:[#allocation2] sm:$0x3]
        %v720 = vstv %s718
        %v721 = vmul.f32 %v720, %v719
        %v722 = vadd.f32 %v721, 0.0
        %s723 = sld [smem:[#allocation7 + $0x1]]
        %v724 = vld [vmem:[#allocation2 + $0x1] sm:$0x1]
        %v725 = vstv %s723
        %v726 = vmul.f32 %v725, %v724
        %728 = vrot.lane.b32.xlu0 %v726, 127
        %v729 = vpop.permute.xlu0 %728
        %v730 = vrot.slane %v729, 7
        %vm731 = vcmask 1039360
        %v732 = vsel %vm731, %v730, %v729
        %v734 = vadd.f32 %v722, %v732
        %s735 = sld [smem:[#allocation7 + $0x2]]
        %v736 = vstv %s735
        %v737 = vmul.f32 %v736, %v724
        %739 = vrot.lane.b32.xlu0 %v737, 126
        %v740 = vpop.permute.xlu0 %739
        %v741 = vrot.slane %v740, 7
        %vm742 = vcmask 1031168
        %v743 = vsel %vm742, %v741, %v740
        %v745 = vadd.f32 %v734, %v743
        %v746 = vxor.u32 %v745, 2147483648
        %v747 = vmul.f32 %v746, 1.442695
        %v748 = vpow.pop %v747
        %v749 = vadd.f32 %v748, 1.0
        %v750 = vrcp.pop %v749
        %v751 = vmul.f32 1.0, %v750
        %v752 = vld [vmem:[%s150] sm:$0xff]
        %v753 = vld [vmem:[%s150 + $0x8] sm:$0xff]
        %v754 = vld [vmem:[%s150 + $0x10] sm:$0xff]
        %v755 = vld [vmem:[%s150 + $0x18] sm:$0xff]
        %v756 = vld [vmem:[%s150 + $0x20] sm:$0xff]
        %v757 = vld [vmem:[%s150 + $0x28] sm:$0xff]
        %v758 = vld [vmem:[%s150 + $0x30] sm:$0xff]
        %v759 = vld [vmem:[%s150 + $0x38] sm:$0xff]
        %v760 = vld [vmem:[%s150 + $0x40] sm:$0xff]
        %v761 = vld [vmem:[%s150 + $0x48] sm:$0xff]
        %v762 = vld [vmem:[%s150 + $0x50] sm:$0xff]
        %v763 = vld [vmem:[%s150 + $0x58] sm:$0xff]
        %v764 = vld [vmem:[%s150 + $0x60] sm:$0xff]
        %v765 = vld [vmem:[%s150 + $0x68] sm:$0xff]
        %v766 = vld [vmem:[%s150 + $0x70] sm:$0xff]
        %v767 = vld [vmem:[%s150 + $0x78] sm:$0xff]
        %v768 = vld [vmem:[%s150 + $0x80] sm:$0xff]
        %v769 = vld [vmem:[%s150 + $0x88] sm:$0xff]
        %v770 = vld [vmem:[%s150 + $0x90] sm:$0xff]
        %v771 = vld [vmem:[%s150 + $0x98] sm:$0xff]
        %v772 = vld [vmem:[%s150 + $0xa0] sm:$0xff]
        %v773 = vld [vmem:[%s150 + $0xa8] sm:$0xff]
        %v774 = vld [vmem:[%s150 + $0xb0] sm:$0xff]
        %v775 = vld [vmem:[%s150 + $0xb8] sm:$0xff]
        %v776 = vld [vmem:[%s150 + $0xc0] sm:$0xff]
        %v777 = vld [vmem:[%s150 + $0xc8] sm:$0xff]
        %v778 = vld [vmem:[%s150 + $0xd0] sm:$0xff]
        %v779 = vld [vmem:[%s150 + $0xd8] sm:$0xff]
        %v780 = vld [vmem:[%s150 + $0xe0] sm:$0xff]
        %v781 = vld [vmem:[%s150 + $0xe8] sm:$0xff]
        %v782 = vld [vmem:[%s150 + $0xf0] sm:$0xff]
        %v783 = vld [vmem:[%s150 + $0xf8] sm:$0xff]
        %v785 = vlaneseq
        %v786 = vshrl.u32 %v785, 7
        %v787 = vsub.s32 0, %v786
        %v788 = vrot.slane %v751, %v787
        %v789 = vlaneseq
        %v790 = vshrl.u32 %v789, 7
        %v791 = vsub.s32 1, %v790
        %v792 = vrot.slane %v751, %v791
        %v795 = vlaneseq
        %v796 = vshrl.u32 %v795, 7
        %v797 = vsub.s32 0, %v796
        %v798 = vrot.slane %v788, %v797
        %s800 = sor.u32 256, 120
        %801 = vbcast.lane.b32.xlu0 %v798, %s800
        %v802 = vpop.permute.xlu0 %801
        %v803 = vlaneseq
        %v804 = vshrl.u32 %v803, 7
        %v805 = vsub.s32 0, %v804
        %v806 = vrot.slane %v792, %v805
        %808 = vbcast.lane.b32.xlu0 %v806, 256
        %v809 = vpop.permute.xlu0 %808
        %s811 = sor.u32 256, 8
        %812 = vbcast.lane.b32.xlu0 %v806, %s811
        %v813 = vpop.permute.xlu0 %812
        %v814 = vlaneseq
        %v815 = vshrl.u32 %v814, 7
        %v816 = vsub.s32 7, %v815
        %v817 = vrot.slane %v802, %v816
        %v818 = vlaneseq
        %v819 = vshrl.u32 %v818, 7
        %v820 = vsub.s32 0, %v819
        %v821 = vrot.slane %v809, %v820
        %v822 = vlaneseq
        %v823 = vshrl.u32 %v822, 7
        %v824 = vsub.s32 1, %v823
        %v825 = vrot.slane %v809, %v824
        %v826 = vlaneseq
        %v827 = vshrl.u32 %v826, 7
        %v828 = vsub.s32 2, %v827
        %v829 = vrot.slane %v809, %v828
        %v830 = vlaneseq
        %v831 = vshrl.u32 %v830, 7
        %v832 = vsub.s32 3, %v831
        %v833 = vrot.slane %v809, %v832
        %v834 = vlaneseq
        %v835 = vshrl.u32 %v834, 7
        %v836 = vsub.s32 4, %v835
        %v837 = vrot.slane %v809, %v836
        %v838 = vlaneseq
        %v839 = vshrl.u32 %v838, 7
        %v840 = vsub.s32 5, %v839
        %v841 = vrot.slane %v809, %v840
        %v842 = vlaneseq
        %v843 = vshrl.u32 %v842, 7
        %v844 = vsub.s32 6, %v843
        %v845 = vrot.slane %v809, %v844
        %v846 = vlaneseq
        %v847 = vshrl.u32 %v846, 7
        %v848 = vsub.s32 7, %v847
        %v849 = vrot.slane %v809, %v848
        %v850 = vlaneseq
        %v851 = vshrl.u32 %v850, 7
        %v852 = vsub.s32 0, %v851
        %v853 = vrot.slane %v813, %v852
        %v854 = vlaneseq
        %v855 = vshrl.u32 %v854, 7
        %v856 = vsub.s32 1, %v855
        %v857 = vrot.slane %v813, %v856
        %v858 = vlaneseq
        %v859 = vshrl.u32 %v858, 7
        %v860 = vsub.s32 2, %v859
        %v861 = vrot.slane %v813, %v860
        %v862 = vlaneseq
        %v863 = vshrl.u32 %v862, 7
        %v864 = vsub.s32 3, %v863
        %v865 = vrot.slane %v813, %v864
        %v866 = vlaneseq
        %v867 = vshrl.u32 %v866, 7
        %v868 = vsub.s32 4, %v867
        %v869 = vrot.slane %v813, %v868
        %v870 = vlaneseq
        %v871 = vshrl.u32 %v870, 7
        %v872 = vsub.s32 5, %v871
        %v873 = vrot.slane %v813, %v872
        %v874 = vlaneseq
        %v875 = vshrl.u32 %v874, 7
        %v876 = vsub.s32 6, %v875
        %v877 = vrot.slane %v813, %v876
        %v878 = vmul.f32 %v752, %v817
        %v879 = vmul.f32 %v753, %v817
        %v880 = vmul.f32 %v754, %v821
        %v881 = vmul.f32 %v755, %v821
        %v882 = vmul.f32 %v756, %v825
        %v883 = vmul.f32 %v757, %v825
        %v884 = vmul.f32 %v758, %v829
        %v885 = vmul.f32 %v759, %v829
        %v886 = vmul.f32 %v760, %v833
        %v887 = vmul.f32 %v761, %v833
        %v888 = vmul.f32 %v762, %v837
        %v889 = vmul.f32 %v763, %v837
        %v890 = vmul.f32 %v764, %v841
        %v891 = vmul.f32 %v765, %v841
        %v892 = vmul.f32 %v766, %v845
        %v893 = vmul.f32 %v767, %v845
        %v894 = vmul.f32 %v768, %v849
        %v895 = vmul.f32 %v769, %v849
        %v896 = vmul.f32 %v770, %v853
        %v897 = vmul.f32 %v771, %v853
        %v898 = vmul.f32 %v772, %v857
        %v899 = vmul.f32 %v773, %v857
        %v900 = vmul.f32 %v774, %v861
        %v901 = vmul.f32 %v775, %v861
        %v902 = vmul.f32 %v776, %v865
        %v903 = vmul.f32 %v777, %v865
        %v904 = vmul.f32 %v778, %v869
        %v905 = vmul.f32 %v779, %v869
        %v906 = vmul.f32 %v780, %v873
        %v907 = vmul.f32 %v781, %v873
        %v908 = vmul.f32 %v782, %v877
        %v909 = vmul.f32 %v783, %v877
        %910 = vst.msk [vmem:[%s175] sm:$0xff] %vm208, %v878
        %911 = vst.msk [vmem:[%s175 + $0x8] sm:$0xff] %vm208, %v879
        %912 = vst.msk [vmem:[%s175 + $0x10] sm:$0xff] %vm208, %v880
        %913 = vst.msk [vmem:[%s175 + $0x18] sm:$0xff] %vm208, %v881
        %914 = vst.msk [vmem:[%s175 + $0x20] sm:$0xff] %vm208, %v882
        %915 = vst.msk [vmem:[%s175 + $0x28] sm:$0xff] %vm208, %v883
        %916 = vst.msk [vmem:[%s175 + $0x30] sm:$0xff] %vm208, %v884
        %917 = vst.msk [vmem:[%s175 + $0x38] sm:$0xff] %vm208, %v885
        %918 = vst.msk [vmem:[%s175 + $0x40] sm:$0xff] %vm208, %v886
        %919 = vst.msk [vmem:[%s175 + $0x48] sm:$0xff] %vm208, %v887
        %920 = vst.msk [vmem:[%s175 + $0x50] sm:$0xff] %vm208, %v888
        %921 = vst.msk [vmem:[%s175 + $0x58] sm:$0xff] %vm208, %v889
        %922 = vst.msk [vmem:[%s175 + $0x60] sm:$0xff] %vm208, %v890
        %923 = vst.msk [vmem:[%s175 + $0x68] sm:$0xff] %vm208, %v891
        %924 = vst.msk [vmem:[%s175 + $0x70] sm:$0xff] %vm208, %v892
        %925 = vst.msk [vmem:[%s175 + $0x78] sm:$0xff] %vm208, %v893
        %926 = vst.msk [vmem:[%s175 + $0x80] sm:$0xff] %vm208, %v894
        %927 = vst.msk [vmem:[%s175 + $0x88] sm:$0xff] %vm208, %v895
        %928 = vst.msk [vmem:[%s175 + $0x90] sm:$0xff] %vm208, %v896
        %929 = vst.msk [vmem:[%s175 + $0x98] sm:$0xff] %vm208, %v897
        %930 = vst.msk [vmem:[%s175 + $0xa0] sm:$0xff] %vm208, %v898
        %931 = vst.msk [vmem:[%s175 + $0xa8] sm:$0xff] %vm208, %v899
        %932 = vst.msk [vmem:[%s175 + $0xb0] sm:$0xff] %vm208, %v900
        %933 = vst.msk [vmem:[%s175 + $0xb8] sm:$0xff] %vm208, %v901
        %934 = vst.msk [vmem:[%s175 + $0xc0] sm:$0xff] %vm208, %v902
        %935 = vst.msk [vmem:[%s175 + $0xc8] sm:$0xff] %vm208, %v903
        %936 = vst.msk [vmem:[%s175 + $0xd0] sm:$0xff] %vm208, %v904
        %937 = vst.msk [vmem:[%s175 + $0xd8] sm:$0xff] %vm208, %v905
        %938 = vst.msk [vmem:[%s175 + $0xe0] sm:$0xff] %vm208, %v906
        %939 = vst.msk [vmem:[%s175 + $0xe8] sm:$0xff] %vm208, %v907
        %940 = vst.msk [vmem:[%s175 + $0xf0] sm:$0xff] %vm208, %v908
        %941 = vst.msk [vmem:[%s175 + $0xf8] sm:$0xff] %vm208, %v909
        %s942 = sand.u32 %s75, 1
        %s943 = scalar_lea.sflag [#allocation5], %s942
        %s944 = sand.u32 %s75, 1
        %s945 = smul.addr %s944, 256
        %s946 = scalar_lea.vmem [#allocation8], %s945
        // Predicated region
        $region37: #{tpu_custom_call.1} parent=27 // pred_check
          %p947 = pneg %p85
        $region38: #{tpu_custom_call.1} parent=27 // pred_check_branch
          %949 = sbr.rel (%p947) target = $region40
        $region39: #{tpu_custom_call.1} parent=27 // pred_region
          %s951 = ssub.s32 4096, 4096
          %952 = vsyncadd %s943, %s951
          %s953 = smul.addr %s20, 32
          %s954 = smul.addr %s953, 128
          %s955 = scalar_lea.hbm %s2, %s954
          %s956 = sshll.u32 %s946, 4
          %s957 = int_to_ptr.vmem [resolvable:$true] %s956
          %962 = dma.vmem_to_hbm [thread:$0]  %s957, 4096, %s955, %s943, 128, 128, 8
        $region40: #{tpu_custom_call.1} parent=27 // pred_fallthru
          _
      $region28: #{tpu_custom_call.1} parent=5 // pred_fallthru
        _
      %p963 = scmp.le.s32.totalorder 2, %s15
      // Predicated region
      $region41: #{tpu_custom_call.1} parent=5 // pred_check
        %p964 = pneg %p963
      $region42: #{tpu_custom_call.1} parent=5 // pred_check_branch
        %966 = sbr.rel (%p964) target = $region44
      $region43: #{tpu_custom_call.1} parent=5 // pred_region
        %s967 = ssub.s32 %s15, 2
        // Predicated region
        $region45: #{tpu_custom_call.1} parent=43 // pred_check
          %p968 = pneg %p91
        $region46: #{tpu_custom_call.1} parent=43 // pred_check_branch
          %970 = sbr.rel (%p968) target = $region48
        $region47: #{tpu_custom_call.1} parent=43 // pred_region
          %s971 = sand.u32 %s76, 1
          %s972 = scalar_lea.sflag [#allocation5], %s971
          %s973 = sand.u32 %s76, 1
          %s974 = smul.addr %s973, 256
          %s975 = scalar_lea.vmem [#allocation8], %s974
          %976 = dma.done %s972, 4096
        $region48: #{tpu_custom_call.1} parent=43 // pred_fallthru
          _
      $region44: #{tpu_custom_call.1} parent=5 // pred_fallthru
        _
    $region6: #{tpu_custom_call.1} parent=1 // loop_footer
      %s19 = sadd.s32 1, %s15
    $region7: #{tpu_custom_call.1} parent=1 // loop_footer_branch
      %14 = sbr.rel target = $region3
    $region8: #{tpu_custom_call.1} parent=1 // loop_exit
      _
    %977 = vsyncpa [#allocation4], 1
    %s978 = scalar_lea.sflag [#allocation4], 1
    %979 = vsyncpa %s978, 1
    %980 = vsyncpa [#allocation5], 1
    %s981 = scalar_lea.sflag [#allocation5], 1
    %982 = vsyncpa %s981, 1
    %983 = vsyncpa [#allocation6], 1
    %s984 = scalar_lea.sflag [#allocation6], 1
    %985 = vsyncpa %s984, 1

</llo_original>
